<compile_context>
chip_gen: v7x
topology: tpu7x:2x2x1
jax: 0.10.0
libtpu: 0.0.40
codegen_flags: <defaults>
</compile_context>

<pallas_src>
import jax
import jax.numpy as jnp
from jax import lax
from jax.experimental import pallas as pl
from jax.experimental.pallas import tpu as pltpu

EPS = 1e-5


def _rsbu_kernel(x_ref, xt_ref, mask1_ref, res_ref,
                 w1_ref, b1_ref, w2_ref, b2_ref,
                 bn1g_ref, bn1b_ref, bn2g_ref, bn2b_ref,
                 fc1w_ref, fc1b_ref, fcbng_ref, fcbnb_ref,
                 fc2w_ref, fc2b_ref,
                 maskl_ref, maskr_ref, pool_ref, expand_ref,
                 out_ref):
    f32 = jnp.float32
    bf16 = jnp.bfloat16

    # ---- BN1 statistics (training mode): per-channel over the full B*L lane axis
    x = x_ref[...]                                            # (Cin, B*L)
    m1 = jnp.mean(x, axis=1, keepdims=True)                   # (Cin, 1)
    v1 = jnp.mean((x - m1) ** 2, axis=1, keepdims=True)
    m1t = jnp.concatenate([m1, m1, m1], axis=0)               # (3*Cin, 1) tap-tiled
    v1t = jnp.concatenate([v1, v1, v1], axis=0)

    # ---- conv1: BN -> ReLU on the tap-stacked (im2col) input, mask the
    #      zero-padding taps, then a single MXU matmul (K = 3*Cin).
    xt = xt_ref[...]                                          # (3*Cin, B*Lout)
    h1 = (xt - m1t) * lax.rsqrt(v1t + EPS) * bn1g_ref[...] + bn1b_ref[...]
    h1 = jnp.maximum(h1, 0.0) * mask1_ref[...]
    y1 = jnp.dot(w1_ref[...], h1.astype(bf16),
                 preferred_element_type=f32) + b1_ref[...]    # (Cout, B*Lout)

    # ---- BN2 -> ReLU
    m2 = jnp.mean(y1, axis=1, keepdims=True)
    v2 = jnp.mean((y1 - m2) ** 2, axis=1, keepdims=True)
    h2 = jnp.maximum(
        (y1 - m2) * lax.rsqrt(v2 + EPS) * bn2g_ref[...] + bn2b_ref[...], 0.0)

    # ---- conv2 (stride 1): taps via lane rotation + batch-boundary masks,
    #      fused into a single matmul with K = 3*Cout.
    n_lane = h2.shape[1]
    t_left = pltpu.roll(h2, shift=1, axis=1) * maskl_ref[...]            # h2[:, j-1]
    t_right = pltpu.roll(h2, shift=n_lane - 1, axis=1) * maskr_ref[...]  # h2[:, j+1]
    ht2 = jnp.concatenate([t_left, h2, t_right], axis=0).astype(bf16)    # (3*Cout, B*Lout)
    y2 = jnp.dot(w2_ref[...], ht2,
                 preferred_element_type=f32) + b2_ref[...]    # (Cout, B*Lout)

    # ---- channel-shared soft threshold: GAP -> FC -> sigmoid
    x_abs = jnp.abs(y2)
    gap = jnp.dot(x_abs, pool_ref[...], preferred_element_type=f32)      # (Cout, B)

    z = jnp.dot(fc1w_ref[...], gap, preferred_element_type=f32) + fc1b_ref[...]
    mz = jnp.mean(z, axis=1, keepdims=True)
    vz = jnp.mean((z - mz) ** 2, axis=1, keepdims=True)
    z = jnp.maximum(
        (z - mz) * lax.rsqrt(vz + EPS) * fcbng_ref[...] + fcbnb_ref[...], 0.0)
    z = jnp.dot(fc2w_ref[...], z, preferred_element_type=f32) + fc2b_ref[...]
    alpha = jax.nn.sigmoid(z)                                            # (Cout, B)

    thr = gap * alpha                                                    # (Cout, B)
    thr_full = jnp.dot(thr, expand_ref[...], preferred_element_type=f32) # (Cout, B*Lout)
    n_sub = jnp.maximum(x_abs - thr_full, 0.0)
    shrunk = jnp.where(y2 >= 0.0, n_sub, -n_sub)

    out_ref[...] = shrunk + res_ref[...]


def rsbu_cs_forward(x, p, *, down_sample):
    """x: (B, Cin, L) float32 (PyTorch NCL).  Returns (B, Cout, Lout)."""
    B, Cin, L = x.shape
    Cout = p["w1"].shape[0]
    stride = 2 if down_sample else 1
    Lout = (L + 2 * 1 - 3) // stride + 1          # conv1 output length (k=3, pad=1)
    BL, BLout = B * L, B * Lout
    f32 = jnp.float32

    # ---- layout glue: NCL -> channel-major (C, B*L)
    x_cm = jnp.transpose(x, (1, 0, 2)).reshape(Cin, BL)

    # residual branch (glue): AvgPool1d(kernel_size=1, stride=2) == ::2 subsample,
    # then zero-channel concat mirroring torch.cat((input, zeros_like(input)), 1)
    res = x
    if down_sample:
        res = res[:, :, ::2]
    if Cin != Cout:
        res = jnp.concatenate([res, jnp.zeros_like(res)], axis=1)
    assert res.shape == (B, Cout, Lout)
    res_cm = jnp.transpose(res, (1, 0, 2)).reshape(Cout, BLout)

    # ---- im2col gather (pure layout glue) for conv1: tap-stacked input.
    #      xt[k*Cin + c, b*Lout + j] = x[b, c, stride*j + k - 1]  (0 at padding)
    xp = jnp.pad(x, ((0, 0), (0, 0), (1, 1)))
    taps = [xp[:, :, k:k + stride * (Lout - 1) + 1:stride] for k in range(3)]
    xt = jnp.stack(taps, axis=0)                                # (3, B, Cin, Lout)
    xt = jnp.transpose(xt, (0, 2, 1, 3)).reshape(3 * Cin, BLout)

    # validity mask for the zero-padded taps (applied AFTER BN+ReLU in-kernel,
    # since BN(0) != 0); depends only on (tap k, position j)
    j = jnp.arange(Lout)
    src = stride * j[None, :] + jnp.arange(3)[:, None] - 1      # (3, Lout)
    valid = ((src >= 0) & (src < L)).astype(f32)
    mask1 = jnp.broadcast_to(valid[:, None, None, :], (3, Cin, B, Lout))
    mask1 = mask1.reshape(3 * Cin, BLout)

    # conv2 batch-boundary masks for the rolled taps (precomputed constants)
    jj = jnp.arange(BLout) % Lout
    mask_l = (jj != 0).astype(f32)[None, :]                     # zero where j == 0
    mask_r = (jj != Lout - 1).astype(f32)[None, :]              # zero where j == Lout-1

    # tiny constant pooling / broadcast matrices (O(B * B*Lout), precomputed)
    seg = jnp.arange(BLout) // Lout
    pool = (seg[:, None] == jnp.arange(B)[None, :]).astype(f32) / Lout   # (B*Lout, B)
    expand = (jnp.arange(B)[:, None] == seg[None, :]).astype(f32)        # (B, B*Lout)

    # conv weights reshaped to match the tap-stacked rows: [cout, k*Cin + c]
    w1r = jnp.transpose(p["w1"], (0, 2, 1)).reshape(Cout, 3 * Cin).astype(jnp.bfloat16)
    w2r = jnp.transpose(p["w2"], (0, 2, 1)).reshape(Cout, 3 * Cout).astype(jnp.bfloat16)

    col = lambda a: a.reshape(-1, 1).astype(f32)
    args = (
        x_cm, xt, mask1, res_cm,
        w1r, col(p["b1"]), w2r, col(p["b2"]),
        jnp.tile(col(p["bn1_g"]), (3, 1)), jnp.tile(col(p["bn1_b"]), (3, 1)),
        col(p["bn2_g"]), col(p["bn2_b"]),
        p["fc1_w"].astype(f32), col(p["fc1_b"]),
        col(p["fcbn_g"]), col(p["fcbn_b"]),
        p["fc2_w"].astype(f32), col(p["fc2_b"]),
        mask_l, mask_r, pool, expand,
    )

    # Everything fits in a fraction of VMEM at these shapes -> no grid.  For
    # production B*L, tile the lane axis with a grid + BN sum/sumsq accumulator
    # scratch finalized via pl.when ("parallel" semantics for v7x dual-TC).
    vmem = pl.BlockSpec(memory_space=pltpu.MemorySpace.VMEM)
    out_cm = pl.pallas_call(
        _rsbu_kernel,
        out_shape=jax.ShapeDtypeStruct((Cout, BLout), f32),
        in_specs=[vmem] * len(args),
        out_specs=vmem,
    )(*args)
    return jnp.transpose(out_cm.reshape(Cout, B, Lout), (1, 0, 2))


def rsbu_cs_reference(x, p, *, down_sample):
    """Pure-JAX reference mirroring the PyTorch forward (training-mode BN)."""
    B, Cin, L = x.shape
    Cout = p["w1"].shape[0]
    stride = 2 if down_sample else 1

    def bn(h, g, b, axes):
        m = jnp.mean(h, axis=axes, keepdims=True)
        v = jnp.mean((h - m) ** 2, axis=axes, keepdims=True)
        shp = [1] * h.ndim
        shp[1] = -1
        return (h - m) / jnp.sqrt(v + EPS) * g.reshape(shp) + b.reshape(shp)

    def conv(h, w, b, s):
        y = lax.conv_general_dilated(h, w, window_strides=(s,), padding=((1, 1),),
                                     dimension_numbers=("NCH", "OIH", "NCH"))
        return y + b.reshape(1, -1, 1)

    h = jnp.maximum(bn(x, p["bn1_g"], p["bn1_b"], (0, 2)), 0.0)
    y = conv(h, p["w1"], p["b1"], stride)
    h2 = jnp.maximum(bn(y, p["bn2_g"], p["bn2_b"], (0, 2)), 0.0)
    y2 = conv(h2, p["w2"], p["b2"], 1)

    x_abs = jnp.abs(y2)
    gap = jnp.mean(x_abs, axis=2)                              # (B, Cout)
    z = gap @ p["fc1_w"].T + p["fc1_b"]
    z = jnp.maximum(bn(z, p["fcbn_g"], p["fcbn_b"], (0,)), 0.0)
    z = z @ p["fc2_w"].T + p["fc2_b"]
    alpha = jax.nn.sigmoid(z)
    thr = (gap * alpha)[:, :, None]
    shrunk = jnp.sign(y2) * jnp.maximum(x_abs - thr, 0.0)

    res = x
    if down_sample:
        res = res[:, :, ::2]
    if Cin != Cout:
        res = jnp.concatenate([res, jnp.zeros_like(res)], axis=1)
    return shrunk + res


def init_params(key, Cin, Cout):
    ks = jax.random.split(key, 8)
    f32 = jnp.float32
    return {
        "bn1_g": jnp.ones((Cin,), f32), "bn1_b": jnp.zeros((Cin,), f32),
        "w1": 0.2 * jax.random.normal(ks[0], (Cout, Cin, 3), f32),
        "b1": 0.1 * jax.random.normal(ks[1], (Cout,), f32),
        "bn2_g": jnp.ones((Cout,), f32), "bn2_b": jnp.zeros((Cout,), f32),
        "w2": 0.2 * jax.random.normal(ks[2], (Cout, Cout, 3), f32),
        "b2": 0.1 * jax.random.normal(ks[3], (Cout,), f32),
        "fc1_w": 0.2 * jax.random.normal(ks[4], (Cout, Cout), f32),
        "fc1_b": 0.1 * jax.random.normal(ks[5], (Cout,), f32),
        "fcbn_g": jnp.ones((Cout,), f32), "fcbn_b": jnp.zeros((Cout,), f32),
        "fc2_w": 0.2 * jax.random.normal(ks[6], (Cout, Cout), f32),
        "fc2_b": 0.1 * jax.random.normal(ks[7], (Cout,), f32),
    }


if __name__ == "__main__":
    key = jax.random.PRNGKey(0)
    kx, kp = jax.random.split(key)

    # RSBU_CS(in_channels=8, out_channels=16, down_sample=True) on (B=8, C=8, L=32):
    # flattened lane axes are 256 (input) and 128 (output) -> lane-dense.
    B, Cin, Cout, L = 8, 8, 16, 32
    down_sample = True

    x = jax.random.normal(kx, (B, Cin, L), jnp.float32)
    params = init_params(kp, Cin, Cout)

    out = jax.block_until_ready(rsbu_cs_forward(x, params, down_sample=down_sample))
    ref = jax.block_until_ready(rsbu_cs_reference(x, params, down_sample=down_sample))

    assert out.shape == ref.shape == (B, Cout, L // 2)
    if not jnp.allclose(out, ref, atol=5e-2, rtol=5e-2):
        err = float(jnp.max(jnp.abs(out - ref)))
        raise AssertionError(
            f"Pallas RSBU_CS output does not match JAX reference (max |err| = {err})")
    print("KERNEL_OK")
</pallas_src>

<mosaic_0001>
module attributes {stable_mosaic.version = 11 : i64} {
  func.func @_rsbu_kernel(%arg0: memref<8x256xf32, #tpu.memory_space<vmem>>, %arg1: memref<24x128xf32, #tpu.memory_space<vmem>>, %arg2: memref<24x128xf32, #tpu.memory_space<vmem>>, %arg3: memref<16x128xf32, #tpu.memory_space<vmem>>, %arg4: memref<16x24xbf16, #tpu.memory_space<vmem>>, %arg5: memref<16x1xf32, #tpu.memory_space<vmem>>, %arg6: memref<16x48xbf16, #tpu.memory_space<vmem>>, %arg7: memref<16x1xf32, #tpu.memory_space<vmem>>, %arg8: memref<24x1xf32, #tpu.memory_space<vmem>>, %arg9: memref<24x1xf32, #tpu.memory_space<vmem>>, %arg10: memref<16x1xf32, #tpu.memory_space<vmem>>, %arg11: memref<16x1xf32, #tpu.memory_space<vmem>>, %arg12: memref<16x16xf32, #tpu.memory_space<vmem>>, %arg13: memref<16x1xf32, #tpu.memory_space<vmem>>, %arg14: memref<16x1xf32, #tpu.memory_space<vmem>>, %arg15: memref<16x1xf32, #tpu.memory_space<vmem>>, %arg16: memref<16x16xf32, #tpu.memory_space<vmem>>, %arg17: memref<16x1xf32, #tpu.memory_space<vmem>>, %arg18: memref<1x128xf32, #tpu.memory_space<vmem>>, %arg19: memref<1x128xf32, #tpu.memory_space<vmem>>, %arg20: memref<128x8xf32, #tpu.memory_space<vmem>>, %arg21: memref<8x128xf32, #tpu.memory_space<vmem>>, %arg22: memref<16x128xf32, #tpu.memory_space<vmem>>) attributes {dimension_semantics = [], scalar_prefetch = 0 : i64, scratch_operands = 0 : i64, tpu.core_type = #tpu.core_type<tc>} {
    %c0 = arith.constant 0 : index
    %c0_0 = arith.constant 0 : index
    %0 = vector.load %arg0[%c0, %c0_0] : memref<8x256xf32, #tpu.memory_space<vmem>>, vector<8x256xf32>
    %cst = arith.constant dense<0.000000e+00> : vector<8xf32>
    %1 = vector.multi_reduction <add>, %0, %cst [1] : vector<8x256xf32> to vector<8xf32>
    %2 = vector.shape_cast %1 : vector<8xf32> to vector<8x1xf32>
    %cst_1 = arith.constant 2.560000e+02 : f32
    %3 = vector.broadcast %cst_1 : f32 to vector<8x1xf32>
    %4 = arith.divf %2, %3 : vector<8x1xf32>
    %5 = vector.broadcast %4 : vector<8x1xf32> to vector<8x256xf32>
    %6 = arith.subf %0, %5 : vector<8x256xf32>
    %7 = arith.mulf %6, %6 : vector<8x256xf32>
    %cst_2 = arith.constant dense<0.000000e+00> : vector<8xf32>
    %8 = vector.multi_reduction <add>, %7, %cst_2 [1] : vector<8x256xf32> to vector<8xf32>
    %9 = vector.shape_cast %8 : vector<8xf32> to vector<8x1xf32>
    %cst_3 = arith.constant 2.560000e+02 : f32
    %10 = vector.broadcast %cst_3 : f32 to vector<8x1xf32>
    %11 = arith.divf %9, %10 : vector<8x1xf32>
    %12 = tpu.concatenate %4, %4, %4 in 0 : vector<8x1xf32>, vector<8x1xf32>, vector<8x1xf32> -> vector<24x1xf32>
    %13 = tpu.concatenate %11, %11, %11 in 0 : vector<8x1xf32>, vector<8x1xf32>, vector<8x1xf32> -> vector<24x1xf32>
    %c0_4 = arith.constant 0 : index
    %c0_5 = arith.constant 0 : index
    %14 = vector.load %arg1[%c0_4, %c0_5] : memref<24x128xf32, #tpu.memory_space<vmem>>, vector<24x128xf32>
    %15 = vector.broadcast %12 : vector<24x1xf32> to vector<24x128xf32>
    %16 = arith.subf %14, %15 : vector<24x128xf32>
    %cst_6 = arith.constant 9.99999974E-6 : f32
    %17 = vector.broadcast %cst_6 : f32 to vector<24x1xf32>
    %18 = arith.addf %13, %17 : vector<24x1xf32>
    %19 = math.rsqrt %18 : vector<24x1xf32>
    %20 = vector.broadcast %19 : vector<24x1xf32> to vector<24x128xf32>
    %21 = arith.mulf %16, %20 : vector<24x128xf32>
    %c0_7 = arith.constant 0 : index
    %c0_8 = arith.constant 0 : index
    %22 = vector.load %arg8[%c0_7, %c0_8] : memref<24x1xf32, #tpu.memory_space<vmem>>, vector<24x1xf32>
    %23 = vector.broadcast %22 : vector<24x1xf32> to vector<24x128xf32>
    %24 = arith.mulf %21, %23 : vector<24x128xf32>
    %c0_9 = arith.constant 0 : index
    %c0_10 = arith.constant 0 : index
    %25 = vector.load %arg9[%c0_9, %c0_10] : memref<24x1xf32, #tpu.memory_space<vmem>>, vector<24x1xf32>
    %26 = vector.broadcast %25 : vector<24x1xf32> to vector<24x128xf32>
    %27 = arith.addf %24, %26 : vector<24x128xf32>
    %cst_11 = arith.constant 0.000000e+00 : f32
    %28 = vector.broadcast %cst_11 : f32 to vector<24x128xf32>
    %29 = arith.maximumf %27, %28 : vector<24x128xf32>
    %c0_12 = arith.constant 0 : index
    %c0_13 = arith.constant 0 : index
    %30 = vector.load %arg2[%c0_12, %c0_13] : memref<24x128xf32, #tpu.memory_space<vmem>>, vector<24x128xf32>
    %31 = arith.mulf %29, %30 : vector<24x128xf32>
    %c0_14 = arith.constant 0 : index
    %c0_15 = arith.constant 0 : index
    %32 = vector.load %arg4[%c0_14, %c0_15] : memref<16x24xbf16, #tpu.memory_space<vmem>>, vector<16x24xbf16>
    %33 = arith.truncf %31 : vector<24x128xf32> to vector<24x128xbf16>
    %cst_16 = arith.constant dense<0.000000e+00> : vector<16x128xf32>
    %34 = tpu.matmul %32, %33, %cst_16 {dimension_numbers = #tpu.dot_dimension_numbers<[1], [0], [0], [1], [0, 0, 1, 1], [], []>} : vector<16x24xbf16>, vector<24x128xbf16>, vector<16x128xf32> -> vector<16x128xf32>
    %c0_17 = arith.constant 0 : index
    %c0_18 = arith.constant 0 : index
    %35 = vector.load %arg5[%c0_17, %c0_18] : memref<16x1xf32, #tpu.memory_space<vmem>>, vector<16x1xf32>
    %36 = vector.broadcast %35 : vector<16x1xf32> to vector<16x128xf32>
    %37 = arith.addf %34, %36 : vector<16x128xf32>
    %cst_19 = arith.constant dense<0.000000e+00> : vector<16xf32>
    %38 = vector.multi_reduction <add>, %37, %cst_19 [1] : vector<16x128xf32> to vector<16xf32>
    %39 = vector.shape_cast %38 : vector<16xf32> to vector<16x1xf32>
    %cst_20 = arith.constant 1.280000e+02 : f32
    %40 = vector.broadcast %cst_20 : f32 to vector<16x1xf32>
    %41 = arith.divf %39, %40 : vector<16x1xf32>
    %42 = vector.broadcast %41 : vector<16x1xf32> to vector<16x128xf32>
    %43 = arith.subf %37, %42 : vector<16x128xf32>
    %44 = arith.mulf %43, %43 : vector<16x128xf32>
    %cst_21 = arith.constant dense<0.000000e+00> : vector<16xf32>
    %45 = vector.multi_reduction <add>, %44, %cst_21 [1] : vector<16x128xf32> to vector<16xf32>
    %46 = vector.shape_cast %45 : vector<16xf32> to vector<16x1xf32>
    %cst_22 = arith.constant 1.280000e+02 : f32
    %47 = vector.broadcast %cst_22 : f32 to vector<16x1xf32>
    %48 = arith.divf %46, %47 : vector<16x1xf32>
    %49 = vector.broadcast %41 : vector<16x1xf32> to vector<16x128xf32>
    %50 = arith.subf %37, %49 : vector<16x128xf32>
    %cst_23 = arith.constant 9.99999974E-6 : f32
    %51 = vector.broadcast %cst_23 : f32 to vector<16x1xf32>
    %52 = arith.addf %48, %51 : vector<16x1xf32>
    %53 = math.rsqrt %52 : vector<16x1xf32>
    %54 = vector.broadcast %53 : vector<16x1xf32> to vector<16x128xf32>
    %55 = arith.mulf %50, %54 : vector<16x128xf32>
    %c0_24 = arith.constant 0 : index
    %c0_25 = arith.constant 0 : index
    %56 = vector.load %arg10[%c0_24, %c0_25] : memref<16x1xf32, #tpu.memory_space<vmem>>, vector<16x1xf32>
    %57 = vector.broadcast %56 : vector<16x1xf32> to vector<16x128xf32>
    %58 = arith.mulf %55, %57 : vector<16x128xf32>
    %c0_26 = arith.constant 0 : index
    %c0_27 = arith.constant 0 : index
    %59 = vector.load %arg11[%c0_26, %c0_27] : memref<16x1xf32, #tpu.memory_space<vmem>>, vector<16x1xf32>
    %60 = vector.broadcast %59 : vector<16x1xf32> to vector<16x128xf32>
    %61 = arith.addf %58, %60 : vector<16x128xf32>
    %cst_28 = arith.constant 0.000000e+00 : f32
    %62 = vector.broadcast %cst_28 : f32 to vector<16x128xf32>
    %63 = arith.maximumf %61, %62 : vector<16x128xf32>
    %c1_i32 = arith.constant 1 : i32
    %64 = tpu.dynamic_rotate %63 by %c1_i32 dim 1 : vector<16x128xf32>, i32 -> vector<16x128xf32>
    %c0_29 = arith.constant 0 : index
    %c0_30 = arith.constant 0 : index
    %65 = vector.load %arg18[%c0_29, %c0_30] : memref<1x128xf32, #tpu.memory_space<vmem>>, vector<1x128xf32>
    %66 = vector.broadcast %65 : vector<1x128xf32> to vector<16x128xf32>
    %67 = arith.mulf %64, %66 : vector<16x128xf32>
    %c127_i32 = arith.constant 127 : i32
    %68 = tpu.dynamic_rotate %63 by %c127_i32 dim 1 : vector<16x128xf32>, i32 -> vector<16x128xf32>
    %c0_31 = arith.constant 0 : index
    %c0_32 = arith.constant 0 : index
    %69 = vector.load %arg19[%c0_31, %c0_32] : memref<1x128xf32, #tpu.memory_space<vmem>>, vector<1x128xf32>
    %70 = vector.broadcast %69 : vector<1x128xf32> to vector<16x128xf32>
    %71 = arith.mulf %68, %70 : vector<16x128xf32>
    %72 = tpu.concatenate %67, %63, %71 in 0 : vector<16x128xf32>, vector<16x128xf32>, vector<16x128xf32> -> vector<48x128xf32>
    %73 = arith.truncf %72 : vector<48x128xf32> to vector<48x128xbf16>
    %c0_33 = arith.constant 0 : index
    %c0_34 = arith.constant 0 : index
    %74 = vector.load %arg6[%c0_33, %c0_34] : memref<16x48xbf16, #tpu.memory_space<vmem>>, vector<16x48xbf16>
    %cst_35 = arith.constant dense<0.000000e+00> : vector<16x128xf32>
    %75 = tpu.matmul %74, %73, %cst_35 {dimension_numbers = #tpu.dot_dimension_numbers<[1], [0], [0], [1], [0, 0, 1, 1], [], []>} : vector<16x48xbf16>, vector<48x128xbf16>, vector<16x128xf32> -> vector<16x128xf32>
    %c0_36 = arith.constant 0 : index
    %c0_37 = arith.constant 0 : index
    %76 = vector.load %arg7[%c0_36, %c0_37] : memref<16x1xf32, #tpu.memory_space<vmem>>, vector<16x1xf32>
    %77 = vector.broadcast %76 : vector<16x1xf32> to vector<16x128xf32>
    %78 = arith.addf %75, %77 : vector<16x128xf32>
    %79 = math.absf %78 : vector<16x128xf32>
    %c0_38 = arith.constant 0 : index
    %c0_39 = arith.constant 0 : index
    %80 = vector.load %arg20[%c0_38, %c0_39] : memref<128x8xf32, #tpu.memory_space<vmem>>, vector<128x8xf32>
    %cst_40 = arith.constant dense<0.000000e+00> : vector<16x8xf32>
    %81 = tpu.matmul %79, %80, %cst_40 {dimension_numbers = #tpu.dot_dimension_numbers<[1], [0], [0], [1], [0, 0, 1, 1], [], []>} : vector<16x128xf32>, vector<128x8xf32>, vector<16x8xf32> -> vector<16x8xf32>
    %c0_41 = arith.constant 0 : index
    %c0_42 = arith.constant 0 : index
    %82 = vector.load %arg12[%c0_41, %c0_42] : memref<16x16xf32, #tpu.memory_space<vmem>>, vector<16x16xf32>
    %cst_43 = arith.constant dense<0.000000e+00> : vector<16x8xf32>
    %83 = tpu.matmul %82, %81, %cst_43 {dimension_numbers = #tpu.dot_dimension_numbers<[1], [0], [0], [1], [0, 0, 1, 1], [], []>} : vector<16x16xf32>, vector<16x8xf32>, vector<16x8xf32> -> vector<16x8xf32>
    %c0_44 = arith.constant 0 : index
    %c0_45 = arith.constant 0 : index
    %84 = vector.load %arg13[%c0_44, %c0_45] : memref<16x1xf32, #tpu.memory_space<vmem>>, vector<16x1xf32>
    %85 = vector.broadcast %84 : vector<16x1xf32> to vector<16x8xf32>
    %86 = arith.addf %83, %85 : vector<16x8xf32>
    %cst_46 = arith.constant dense<0.000000e+00> : vector<16xf32>
    %87 = vector.multi_reduction <add>, %86, %cst_46 [1] : vector<16x8xf32> to vector<16xf32>
    %88 = vector.shape_cast %87 : vector<16xf32> to vector<16x1xf32>
    %cst_47 = arith.constant 8.000000e+00 : f32
    %89 = vector.broadcast %cst_47 : f32 to vector<16x1xf32>
    %90 = arith.divf %88, %89 : vector<16x1xf32>
    %91 = vector.broadcast %90 : vector<16x1xf32> to vector<16x8xf32>
    %92 = arith.subf %86, %91 : vector<16x8xf32>
    %93 = arith.mulf %92, %92 : vector<16x8xf32>
    %cst_48 = arith.constant dense<0.000000e+00> : vector<16xf32>
    %94 = vector.multi_reduction <add>, %93, %cst_48 [1] : vector<16x8xf32> to vector<16xf32>
    %95 = vector.shape_cast %94 : vector<16xf32> to vector<16x1xf32>
    %cst_49 = arith.constant 8.000000e+00 : f32
    %96 = vector.broadcast %cst_49 : f32 to vector<16x1xf32>
    %97 = arith.divf %95, %96 : vector<16x1xf32>
    %98 = vector.broadcast %90 : vector<16x1xf32> to vector<16x8xf32>
    %99 = arith.subf %86, %98 : vector<16x8xf32>
    %cst_50 = arith.constant 9.99999974E-6 : f32
    %100 = vector.broadcast %cst_50 : f32 to vector<16x1xf32>
    %101 = arith.addf %97, %100 : vector<16x1xf32>
    %102 = math.rsqrt %101 : vector<16x1xf32>
    %103 = vector.broadcast %102 : vector<16x1xf32> to vector<16x8xf32>
    %104 = arith.mulf %99, %103 : vector<16x8xf32>
    %c0_51 = arith.constant 0 : index
    %c0_52 = arith.constant 0 : index
    %105 = vector.load %arg14[%c0_51, %c0_52] : memref<16x1xf32, #tpu.memory_space<vmem>>, vector<16x1xf32>
    %106 = vector.broadcast %105 : vector<16x1xf32> to vector<16x8xf32>
    %107 = arith.mulf %104, %106 : vector<16x8xf32>
    %c0_53 = arith.constant 0 : index
    %c0_54 = arith.constant 0 : index
    %108 = vector.load %arg15[%c0_53, %c0_54] : memref<16x1xf32, #tpu.memory_space<vmem>>, vector<16x1xf32>
    %109 = vector.broadcast %108 : vector<16x1xf32> to vector<16x8xf32>
    %110 = arith.addf %107, %109 : vector<16x8xf32>
    %cst_55 = arith.constant 0.000000e+00 : f32
    %111 = vector.broadcast %cst_55 : f32 to vector<16x8xf32>
    %112 = arith.maximumf %110, %111 : vector<16x8xf32>
    %c0_56 = arith.constant 0 : index
    %c0_57 = arith.constant 0 : index
    %113 = vector.load %arg16[%c0_56, %c0_57] : memref<16x16xf32, #tpu.memory_space<vmem>>, vector<16x16xf32>
    %cst_58 = arith.constant dense<0.000000e+00> : vector<16x8xf32>
    %114 = tpu.matmul %113, %112, %cst_58 {dimension_numbers = #tpu.dot_dimension_numbers<[1], [0], [0], [1], [0, 0, 1, 1], [], []>} : vector<16x16xf32>, vector<16x8xf32>, vector<16x8xf32> -> vector<16x8xf32>
    %c0_59 = arith.constant 0 : index
    %c0_60 = arith.constant 0 : index
    %115 = vector.load %arg17[%c0_59, %c0_60] : memref<16x1xf32, #tpu.memory_space<vmem>>, vector<16x1xf32>
    %116 = vector.broadcast %115 : vector<16x1xf32> to vector<16x8xf32>
    %117 = arith.addf %114, %116 : vector<16x8xf32>
    %118 = arith.negf %117 : vector<16x8xf32>
    %119 = math.exp %118 : vector<16x8xf32>
    %cst_61 = arith.constant 1.000000e+00 : f32
    %120 = vector.broadcast %cst_61 : f32 to vector<16x8xf32>
    %121 = arith.addf %120, %119 : vector<16x8xf32>
    %122 = arith.divf %120, %121 : vector<16x8xf32>
    %123 = arith.mulf %81, %122 : vector<16x8xf32>
    %c0_62 = arith.constant 0 : index
    %c0_63 = arith.constant 0 : index
    %124 = vector.load %arg21[%c0_62, %c0_63] : memref<8x128xf32, #tpu.memory_space<vmem>>, vector<8x128xf32>
    %cst_64 = arith.constant dense<0.000000e+00> : vector<16x128xf32>
    %125 = tpu.matmul %123, %124, %cst_64 {dimension_numbers = #tpu.dot_dimension_numbers<[1], [0], [0], [1], [0, 0, 1, 1], [], []>} : vector<16x8xf32>, vector<8x128xf32>, vector<16x128xf32> -> vector<16x128xf32>
    %126 = arith.subf %79, %125 : vector<16x128xf32>
    %cst_65 = arith.constant 0.000000e+00 : f32
    %127 = vector.broadcast %cst_65 : f32 to vector<16x128xf32>
    %128 = arith.maximumf %126, %127 : vector<16x128xf32>
    %cst_66 = arith.constant 0.000000e+00 : f32
    %129 = vector.broadcast %cst_66 : f32 to vector<16x128xf32>
    %130 = arith.cmpf oge, %78, %129 : vector<16x128xf32>
    %cst_67 = arith.constant 0.000000e+00 : f32
    %131 = vector.broadcast %cst_67 : f32 to vector<16x128xf32>
    %132 = arith.subf %131, %128 : vector<16x128xf32>
    %133 = arith.select %130, %128, %132 : vector<16x128xi1>, vector<16x128xf32>
    %c0_68 = arith.constant 0 : index
    %c0_69 = arith.constant 0 : index
    %134 = vector.load %arg3[%c0_68, %c0_69] : memref<16x128xf32, #tpu.memory_space<vmem>>, vector<16x128xf32>
    %135 = arith.addf %133, %134 : vector<16x128xf32>
    %c0_70 = arith.constant 0 : index
    %c0_71 = arith.constant 0 : index
    %136 = vector.load %arg22[%c0_70, %c0_71] : memref<16x128xf32, #tpu.memory_space<vmem>>, vector<16x128xf32>
    tpu.vector_store %arg22[%c0_70, %c0_71], %135 {strides = array<i32>} : memref<16x128xf32, #tpu.memory_space<vmem>>, vector<16x128xf32>,
    return
  }
}

</mosaic_0001>

<llo_original>
// kernel: tpu_custom_call.1
$region0: #{tpu_custom_call.1}
  #allocation0 [shape = 'u32[]', space=smem, size = 0x4, offset = 0x4, fixed_abs, tag = 'smem constant byte address 0x4 - core index']
  #allocation1 [shape = 'u32[144,128]{1,0:T(1,128)}', space=vmem, size = 0x12000, scoped, tag = 'internal scratch']
  %s0 = inlined_call_operand.vmem [shape: f32[8,256], index: 0, kind: input, shape index: {}]
  %s1 = inlined_call_operand.vmem [shape: f32[24,128], index: 1, kind: input, shape index: {}]
  %s2 = inlined_call_operand.vmem [shape: f32[24,128], index: 2, kind: input, shape index: {}]
  %s3 = inlined_call_operand.vmem [shape: f32[16,128], index: 3, kind: input, shape index: {}]
  %s4 = inlined_call_operand.vmem [shape: bf16[16,24], index: 4, kind: input, shape index: {}]
  %s5 = inlined_call_operand.vmem [shape: f32[16,1], index: 5, kind: input, shape index: {}]
  %s6 = inlined_call_operand.vmem [shape: bf16[16,48], index: 6, kind: input, shape index: {}]
  %s7 = inlined_call_operand.vmem [shape: f32[16,1], index: 7, kind: input, shape index: {}]
  %s8 = inlined_call_operand.vmem [shape: f32[24,1], index: 8, kind: input, shape index: {}]
  %s9 = inlined_call_operand.vmem [shape: f32[24,1], index: 9, kind: input, shape index: {}]
  %s10 = inlined_call_operand.vmem [shape: f32[16,1], index: 10, kind: input, shape index: {}]
  %s11 = inlined_call_operand.vmem [shape: f32[16,1], index: 11, kind: input, shape index: {}]
  %s12 = inlined_call_operand.vmem [shape: f32[16,16], index: 12, kind: input, shape index: {}]
  %s13 = inlined_call_operand.vmem [shape: f32[16,1], index: 13, kind: input, shape index: {}]
  %s14 = inlined_call_operand.vmem [shape: f32[16,1], index: 14, kind: input, shape index: {}]
  %s15 = inlined_call_operand.vmem [shape: f32[16,1], index: 15, kind: input, shape index: {}]
  %s16 = inlined_call_operand.vmem [shape: f32[16,16], index: 16, kind: input, shape index: {}]
  %s17 = inlined_call_operand.vmem [shape: f32[16,1], index: 17, kind: input, shape index: {}]
  %s18 = inlined_call_operand.vmem [shape: f32[1,128], index: 18, kind: input, shape index: {}]
  %s19 = inlined_call_operand.vmem [shape: f32[1,128], index: 19, kind: input, shape index: {}]
  %s20 = inlined_call_operand.vmem [shape: f32[128,8], index: 20, kind: input, shape index: {}]
  %s21 = inlined_call_operand.vmem [shape: f32[8,128], index: 21, kind: input, shape index: {}]
  %s22 = inlined_call_operand.hbm [shape: f32[16,128], index: 22, kind: output, shape index: {}]
  %s23 = sld [smem:[#allocation0]]
  $region98: #{tpu_custom_call.1} parent=0
    _
  %s25 = ssub.s32 1, %s23
  %s26 = scalar_select 0, %s25, %s23
  $region1: #{tpu_custom_call.1} parent=0
    #allocation2 [shape = 'u8[8192]{0}', space=vmem, size = 0x2000, scoped, tag = 'output window, operand 0, single buffered']
    #allocation3 [shape = 's32[1]{0}', space=sflag, size = 0x4, scoped, tag = 'scoped memory for tpu_custom_call.1']
    %27 = vsyncpa [#allocation3], 0
    // Predicated region
    $region2: #{tpu_custom_call.1} parent=1 // pred_check
      _
    $region3: #{tpu_custom_call.1} parent=1 // pred_check_branch
      %29 = sbr.rel (0) target = $region5
    $region4: #{tpu_custom_call.1} parent=1 // pred_region
      _
    $region5: #{tpu_custom_call.1} parent=1 // pred_fallthru
      _
    // Predicated region
    $region6: #{tpu_custom_call.1} parent=1 // pred_check
      _
    $region7: #{tpu_custom_call.1} parent=1 // pred_check_branch
      %31 = sbr.rel (0) target = $region9
    $region8: #{tpu_custom_call.1} parent=1 // pred_region
      _
    $region9: #{tpu_custom_call.1} parent=1 // pred_fallthru
      _
    // Predicated region
    $region10: #{tpu_custom_call.1} parent=1 // pred_check
      _
    $region11: #{tpu_custom_call.1} parent=1 // pred_check_branch
      %33 = sbr.rel (0) target = $region13
    $region12: #{tpu_custom_call.1} parent=1 // pred_region
      _
    $region13: #{tpu_custom_call.1} parent=1 // pred_fallthru
      _
    // Predicated region
    $region14: #{tpu_custom_call.1} parent=1 // pred_check
      _
    $region15: #{tpu_custom_call.1} parent=1 // pred_check_branch
      %35 = sbr.rel (0) target = $region17
    $region16: #{tpu_custom_call.1} parent=1 // pred_region
      _
    $region17: #{tpu_custom_call.1} parent=1 // pred_fallthru
      _
    // Predicated region
    $region18: #{tpu_custom_call.1} parent=1 // pred_check
      _
    $region19: #{tpu_custom_call.1} parent=1 // pred_check_branch
      %37 = sbr.rel (0) target = $region21
    $region20: #{tpu_custom_call.1} parent=1 // pred_region
      _
    $region21: #{tpu_custom_call.1} parent=1 // pred_fallthru
      _
    // Predicated region
    $region22: #{tpu_custom_call.1} parent=1 // pred_check
      _
    $region23: #{tpu_custom_call.1} parent=1 // pred_check_branch
      %39 = sbr.rel (0) target = $region25
    $region24: #{tpu_custom_call.1} parent=1 // pred_region
      _
    $region25: #{tpu_custom_call.1} parent=1 // pred_fallthru
      _
    // Predicated region
    $region26: #{tpu_custom_call.1} parent=1 // pred_check
      _
    $region27: #{tpu_custom_call.1} parent=1 // pred_check_branch
      %41 = sbr.rel (0) target = $region29
    $region28: #{tpu_custom_call.1} parent=1 // pred_region
      _
    $region29: #{tpu_custom_call.1} parent=1 // pred_fallthru
      _
    // Predicated region
    $region30: #{tpu_custom_call.1} parent=1 // pred_check
      _
    $region31: #{tpu_custom_call.1} parent=1 // pred_check_branch
      %43 = sbr.rel (0) target = $region33
    $region32: #{tpu_custom_call.1} parent=1 // pred_region
      _
    $region33: #{tpu_custom_call.1} parent=1 // pred_fallthru
      _
    // Predicated region
    $region34: #{tpu_custom_call.1} parent=1 // pred_check
      _
    $region35: #{tpu_custom_call.1} parent=1 // pred_check_branch
      %45 = sbr.rel (0) target = $region37
    $region36: #{tpu_custom_call.1} parent=1 // pred_region
      _
    $region37: #{tpu_custom_call.1} parent=1 // pred_fallthru
      _
    // Predicated region
    $region38: #{tpu_custom_call.1} parent=1 // pred_check
      _
    $region39: #{tpu_custom_call.1} parent=1 // pred_check_branch
      %47 = sbr.rel (0) target = $region41
    $region40: #{tpu_custom_call.1} parent=1 // pred_region
      _
    $region41: #{tpu_custom_call.1} parent=1 // pred_fallthru
      _
    // Predicated region
    $region42: #{tpu_custom_call.1} parent=1 // pred_check
      _
    $region43: #{tpu_custom_call.1} parent=1 // pred_check_branch
      %49 = sbr.rel (0) target = $region45
    $region44: #{tpu_custom_call.1} parent=1 // pred_region
      _
    $region45: #{tpu_custom_call.1} parent=1 // pred_fallthru
      _
    // Predicated region
    $region46: #{tpu_custom_call.1} parent=1 // pred_check
      _
    $region47: #{tpu_custom_call.1} parent=1 // pred_check_branch
      %51 = sbr.rel (0) target = $region49
    $region48: #{tpu_custom_call.1} parent=1 // pred_region
      _
    $region49: #{tpu_custom_call.1} parent=1 // pred_fallthru
      _
    // Predicated region
    $region50: #{tpu_custom_call.1} parent=1 // pred_check
      _
    $region51: #{tpu_custom_call.1} parent=1 // pred_check_branch
      %53 = sbr.rel (0) target = $region53
    $region52: #{tpu_custom_call.1} parent=1 // pred_region
      _
    $region53: #{tpu_custom_call.1} parent=1 // pred_fallthru
      _
    // Predicated region
    $region54: #{tpu_custom_call.1} parent=1 // pred_check
      _
    $region55: #{tpu_custom_call.1} parent=1 // pred_check_branch
      %55 = sbr.rel (0) target = $region57
    $region56: #{tpu_custom_call.1} parent=1 // pred_region
      _
    $region57: #{tpu_custom_call.1} parent=1 // pred_fallthru
      _
    // Predicated region
    $region58: #{tpu_custom_call.1} parent=1 // pred_check
      _
    $region59: #{tpu_custom_call.1} parent=1 // pred_check_branch
      %57 = sbr.rel (0) target = $region61
    $region60: #{tpu_custom_call.1} parent=1 // pred_region
      _
    $region61: #{tpu_custom_call.1} parent=1 // pred_fallthru
      _
    // Predicated region
    $region62: #{tpu_custom_call.1} parent=1 // pred_check
      _
    $region63: #{tpu_custom_call.1} parent=1 // pred_check_branch
      %59 = sbr.rel (0) target = $region65
    $region64: #{tpu_custom_call.1} parent=1 // pred_region
      _
    $region65: #{tpu_custom_call.1} parent=1 // pred_fallthru
      _
    // Predicated region
    $region66: #{tpu_custom_call.1} parent=1 // pred_check
      _
    $region67: #{tpu_custom_call.1} parent=1 // pred_check_branch
      %61 = sbr.rel (0) target = $region69
    $region68: #{tpu_custom_call.1} parent=1 // pred_region
      _
    $region69: #{tpu_custom_call.1} parent=1 // pred_fallthru
      _
    // Predicated region
    $region70: #{tpu_custom_call.1} parent=1 // pred_check
      _
    $region71: #{tpu_custom_call.1} parent=1 // pred_check_branch
      %63 = sbr.rel (0) target = $region73
    $region72: #{tpu_custom_call.1} parent=1 // pred_region
      _
    $region73: #{tpu_custom_call.1} parent=1 // pred_fallthru
      _
    // Predicated region
    $region74: #{tpu_custom_call.1} parent=1 // pred_check
      _
    $region75: #{tpu_custom_call.1} parent=1 // pred_check_branch
      %65 = sbr.rel (0) target = $region77
    $region76: #{tpu_custom_call.1} parent=1 // pred_region
      _
    $region77: #{tpu_custom_call.1} parent=1 // pred_fallthru
      _
    // Predicated region
    $region78: #{tpu_custom_call.1} parent=1 // pred_check
      _
    $region79: #{tpu_custom_call.1} parent=1 // pred_check_branch
      %67 = sbr.rel (0) target = $region81
    $region80: #{tpu_custom_call.1} parent=1 // pred_region
      _
    $region81: #{tpu_custom_call.1} parent=1 // pred_fallthru
      _
    // Predicated region
    $region82: #{tpu_custom_call.1} parent=1 // pred_check
      _
    $region83: #{tpu_custom_call.1} parent=1 // pred_check_branch
      %69 = sbr.rel (0) target = $region85
    $region84: #{tpu_custom_call.1} parent=1 // pred_region
      _
    $region85: #{tpu_custom_call.1} parent=1 // pred_fallthru
      _
    // Predicated region
    $region86: #{tpu_custom_call.1} parent=1 // pred_check
      _
    $region87: #{tpu_custom_call.1} parent=1 // pred_check_branch
      %71 = sbr.rel (0) target = $region89
    $region88: #{tpu_custom_call.1} parent=1 // pred_region
      _
    $region89: #{tpu_custom_call.1} parent=1 // pred_fallthru
      _
    %v73 = vld [vmem:[%s0] sm:$0xff]
    %v74 = vld [vmem:[%s0 + $0x8] sm:$0xff]
    %v75 = vadd.f32 %v73, %v74
    %76 = vadd.xlane.f32.xlu0 %v75
    %v77 = vpop.xlane.xlu0 %76
    %v78 = vrcp.pop 256.0
    %v79 = vmul.f32 %v77, %v78
    %v80 = vsub.f32 %v73, %v79
    %v81 = vsub.f32 %v74, %v79
    %v82 = vmul.f32 %v80, %v80
    %v83 = vmul.f32 %v81, %v81
    %v84 = vadd.f32 %v82, %v83
    %85 = vadd.xlane.f32.xlu0 %v84
    %v86 = vpop.xlane.xlu0 %85
    %v87 = vmul.f32 %v86, %v78
    %v88 = vld [vmem:[%s1] sm:$0xff]
    %v89 = vld [vmem:[%s1 + $0x8] sm:$0xff]
    %v90 = vld [vmem:[%s1 + $0x10] sm:$0xff]
    %92 = vset.pattern.permute.xlu0 0
    %93 = vperm.xlu0 %92, %v79
    %v94 = vpop.permute.xlu0 %93
    %v96 = vsub.f32 %v88, %v94
    %v97 = vsub.f32 %v89, %v94
    %v98 = vsub.f32 %v90, %v94
    %v99 = vadd.f32 %v87, 1e-05
    %v100 = vrsqrt.pop %v99
    %102 = vset.pattern.permute.xlu0 0
    %103 = vperm.xlu0 %102, %v100
    %v104 = vpop.permute.xlu0 %103
    %v106 = vmul.f32 %v96, %v104
    %v107 = vmul.f32 %v97, %v104
    %v108 = vmul.f32 %v98, %v104
    %v109 = vld [vmem:[%s8] sm:$0xff]
    %v110 = vld [vmem:[%s8 + $0x8] sm:$0xff]
    %v111 = vld [vmem:[%s8 + $0x10] sm:$0xff]
    %113 = vset.pattern.permute.xlu0 0
    %114 = vperm.xlu0 %113, %v109
    %v115 = vpop.permute.xlu0 %114
    %118 = vset.pattern.permute.xlu0 0
    %119 = vperm.xlu0 %118, %v110
    %v120 = vpop.permute.xlu0 %119
    %123 = vset.pattern.permute.xlu0 0
    %124 = vperm.xlu0 %123, %v111
    %v125 = vpop.permute.xlu0 %124
    %v127 = vmul.f32 %v106, %v115
    %v128 = vmul.f32 %v107, %v120
    %v129 = vmul.f32 %v108, %v125
    %v130 = vld [vmem:[%s9] sm:$0xff]
    %v131 = vld [vmem:[%s9 + $0x8] sm:$0xff]
    %v132 = vld [vmem:[%s9 + $0x10] sm:$0xff]
    %134 = vset.pattern.permute.xlu0 0
    %135 = vperm.xlu0 %134, %v130
    %v136 = vpop.permute.xlu0 %135
    %139 = vset.pattern.permute.xlu0 0
    %140 = vperm.xlu0 %139, %v131
    %v141 = vpop.permute.xlu0 %140
    %144 = vset.pattern.permute.xlu0 0
    %145 = vperm.xlu0 %144, %v132
    %v146 = vpop.permute.xlu0 %145
    %v148 = vadd.f32 %v127, %v136
    %v149 = vadd.f32 %v128, %v141
    %v150 = vadd.f32 %v129, %v146
    %v151 = vmax.f32 %v148, 0.0
    %v152 = vmax.f32 %v149, 0.0
    %v153 = vmax.f32 %v150, 0.0
    %v154 = vld [vmem:[%s2] sm:$0xff]
    %v155 = vld [vmem:[%s2 + $0x8] sm:$0xff]
    %v156 = vld [vmem:[%s2 + $0x10] sm:$0xff]
    %v157 = vmul.f32 %v151, %v154
    %v158 = vmul.f32 %v152, %v155
    %v159 = vmul.f32 %v153, %v156
    %v160 = vld [vmem:[%s4] sm:$0xf]
    %v161 = vld [vmem:[%s4 + $0x4] sm:$0xf]
    %v162 = vpack.c.bf16 %v158, %v157
    %v163 = vpack.c.bf16 %v159, %v159
    %v164 = vld [vmem:[%s5] sm:$0xff]
    %v165 = vld [vmem:[%s5 + $0x8] sm:$0xff]
    %167 = vset.pattern.permute.xlu0 0
    %168 = vperm.xlu0 %167, %v164
    %v169 = vpop.permute.xlu0 %168
    %172 = vset.pattern.permute.xlu0 0
    %173 = vperm.xlu0 %172, %v165
    %v174 = vpop.permute.xlu0 %173
    %v178 = vunpack.c.l.b16 %v160
    %v179 = vunpack.c.l.b16 %v161
    %v180 = vpack.c.b16 %v179, %v178
    %vm181 = vcmask 195584
    %v183 = vsel %vm181, %v180, 0
    %vm185 = vcmask 1043456
    %v187 = vsel %vm185, %v163, 0
    %189 = vmatprep.subr.bf16.mxu0 0
    %190 = vmatpush1.bf16.msra.mxu0 %v162
    %191 = vmatprep.subr.bf16.mxu0 0
    %192 = vmatpush1.bf16.msra.mxu0 %v187
    %193 = vmatprep.subr.bf16.mxu0 0
    %194 = vmatpush1.bf16.msra.mxu0 0
    %195 = vmatprep.subr.bf16.mxu0 0
    %196 = vmatpush1.bf16.msra.mxu0 0
    %197 = vmatprep.subr.bf16.mxu0 0
    %198 = vmatpush1.bf16.msra.mxu0 0
    %199 = vmatprep.subr.bf16.mxu0 0
    %200 = vmatpush1.bf16.msra.mxu0 0
    %201 = vmatprep.subr.bf16.mxu0 0
    %202 = vmatpush1.bf16.msra.mxu0 0
    %203 = vmatprep.subr.bf16.mxu0 0
    %204 = vmatpush1.bf16.msra.mxu0 0
    %205 = vmatprep.subr.bf16.mxu0 0
    %206 = vmatpush1.bf16.msra.mxu0 0
    %207 = vmatprep.subr.bf16.mxu0 0
    %208 = vmatpush1.bf16.msra.mxu0 0
    %209 = vmatprep.subr.bf16.mxu0 0
    %210 = vmatpush1.bf16.msra.mxu0 0
    %211 = vmatprep.subr.bf16.mxu0 0
    %212 = vmatpush1.bf16.msra.mxu0 0
    %213 = vmatprep.subr.bf16.mxu0 0
    %214 = vmatpush1.bf16.msra.mxu0 0
    %215 = vmatprep.subr.bf16.mxu0 0
    %216 = vmatpush1.bf16.msra.mxu0 0
    %217 = vmatprep.subr.bf16.mxu0 0
    %218 = vmatpush1.bf16.msra.mxu0 0
    %219 = vmatprep.subr.bf16.mxu0 0
    %220 = vmatpush1.bf16.msra.mxu0 0
    %221 = vmatprep.mubr.bf16.mxu0 0
    %222 = vmatmul.mubr.bf16.gmra.mrb[0].mxu0 %v183
    %v223 = vpop.f32.mrb[0].mxu0
    %v224 = vadd.f32 %v169, %v223
    %v225 = vpop.f32.mrb[0].mxu0
    %v226 = vpop.f32.mrb[0].mxu0
    %v227 = vadd.f32 %v174, %v226
    %v228 = vpop.f32.mrb[0].mxu0
    %229 = vdwg.mxu0
    %230 = vadd.xlane.f32.xlu0 %v224
    %v231 = vpop.xlane.xlu0 %230
    %232 = vadd.xlane.f32.xlu0 %v227
    %v233 = vpop.xlane.xlu0 %232
    %v234 = vrcp.pop 128.0
    %v235 = vmul.f32 %v231, %v234
    %v236 = vmul.f32 %v233, %v234
    %v237 = vsub.f32 %v224, %v235
    %v238 = vsub.f32 %v227, %v236
    %v239 = vmul.f32 %v237, %v237
    %v240 = vmul.f32 %v238, %v238
    %241 = vadd.xlane.f32.xlu0 %v239
    %v242 = vpop.xlane.xlu0 %241
    %243 = vadd.xlane.f32.xlu0 %v240
    %v244 = vpop.xlane.xlu0 %243
    %v245 = vmul.f32 %v242, %v234
    %v246 = vmul.f32 %v244, %v234
    %v247 = vadd.f32 %v245, 1e-05
    %v248 = vadd.f32 %v246, 1e-05
    %v249 = vrsqrt.pop %v247
    %v250 = vrsqrt.pop %v248
    %v251 = vmul.f32 %v237, %v249
    %v252 = vmul.f32 %v238, %v250
    %v253 = vld [vmem:[%s10] sm:$0xff]
    %v254 = vld [vmem:[%s10 + $0x8] sm:$0xff]
    %256 = vset.pattern.permute.xlu0 0
    %257 = vperm.xlu0 %256, %v253
    %v258 = vpop.permute.xlu0 %257
    %261 = vset.pattern.permute.xlu0 0
    %262 = vperm.xlu0 %261, %v254
    %v263 = vpop.permute.xlu0 %262
    %v265 = vmul.f32 %v251, %v258
    %v266 = vmul.f32 %v252, %v263
    %v267 = vld [vmem:[%s11] sm:$0xff]
    %v268 = vld [vmem:[%s11 + $0x8] sm:$0xff]
    %270 = vset.pattern.permute.xlu0 0
    %271 = vperm.xlu0 %270, %v267
    %v272 = vpop.permute.xlu0 %271
    %275 = vset.pattern.permute.xlu0 0
    %276 = vperm.xlu0 %275, %v268
    %v277 = vpop.permute.xlu0 %276
    %v279 = vadd.f32 %v265, %v272
    %v280 = vadd.f32 %v266, %v277
    %v281 = vmax.f32 %v279, 0.0
    %v282 = vmax.f32 %v280, 0.0
    %283 = vrot.lane.b32.xlu0 %v281, 1
    %v284 = vpop.permute.xlu0 %283
    %285 = vrot.lane.b32.xlu0 %v282, 1
    %v286 = vpop.permute.xlu0 %285
    %v287 = vld [vmem:[%s18] sm:$0x1]
    %v289 = vlaneseq
    %v290 = vshrl.u32 %v289, 7
    %v291 = vsub.s32 0, %v290
    %v292 = vrot.slane %v287, %v291
    %v294 = vmul.f32 %v284, %v292
    %v295 = vmul.f32 %v286, %v292
    %296 = vrot.lane.b32.xlu0 %v281, 127
    %v297 = vpop.permute.xlu0 %296
    %298 = vrot.lane.b32.xlu0 %v282, 127
    %v299 = vpop.permute.xlu0 %298
    %v300 = vld [vmem:[%s19] sm:$0x1]
    %v302 = vlaneseq
    %v303 = vshrl.u32 %v302, 7
    %v304 = vsub.s32 0, %v303
    %v305 = vrot.slane %v300, %v304
    %v307 = vmul.f32 %v297, %v305
    %v308 = vmul.f32 %v299, %v305
    %v309 = vpack.c.bf16 %v295, %v294
    %v310 = vpack.c.bf16 %v282, %v281
    %v311 = vpack.c.bf16 %v308, %v307
    %v312 = vld [vmem:[%s6] sm:$0xf]
    %v313 = vld [vmem:[%s6 + $0x4] sm:$0xf]
    %v314 = vld [vmem:[%s7] sm:$0xff]
    %v315 = vld [vmem:[%s7 + $0x8] sm:$0xff]
    %317 = vset.pattern.permute.xlu0 0
    %318 = vperm.xlu0 %317, %v314
    %v319 = vpop.permute.xlu0 %318
    %322 = vset.pattern.permute.xlu0 0
    %323 = vperm.xlu0 %322, %v315
    %v324 = vpop.permute.xlu0 %323
    %v328 = vunpack.c.l.b16 %v312
    %v329 = vunpack.c.l.b16 %v313
    %v330 = vpack.c.b16 %v329, %v328
    %vm331 = vcmask 392192
    %v333 = vsel %vm331, %v330, 0
    %335 = vmatprep.subr.bf16.mxu0 0
    %336 = vmatpush1.bf16.msra.mxu0 %v309
    %337 = vmatprep.subr.bf16.mxu0 0
    %338 = vmatpush1.bf16.msra.mxu0 %v310
    %339 = vmatprep.subr.bf16.mxu0 0
    %340 = vmatpush1.bf16.msra.mxu0 %v311
    %341 = vmatprep.subr.bf16.mxu0 0
    %342 = vmatpush1.bf16.msra.mxu0 0
    %343 = vmatprep.subr.bf16.mxu0 0
    %344 = vmatpush1.bf16.msra.mxu0 0
    %345 = vmatprep.subr.bf16.mxu0 0
    %346 = vmatpush1.bf16.msra.mxu0 0
    %347 = vmatprep.subr.bf16.mxu0 0
    %348 = vmatpush1.bf16.msra.mxu0 0
    %349 = vmatprep.subr.bf16.mxu0 0
    %350 = vmatpush1.bf16.msra.mxu0 0
    %351 = vmatprep.subr.bf16.mxu0 0
    %352 = vmatpush1.bf16.msra.mxu0 0
    %353 = vmatprep.subr.bf16.mxu0 0
    %354 = vmatpush1.bf16.msra.mxu0 0
    %355 = vmatprep.subr.bf16.mxu0 0
    %356 = vmatpush1.bf16.msra.mxu0 0
    %357 = vmatprep.subr.bf16.mxu0 0
    %358 = vmatpush1.bf16.msra.mxu0 0
    %359 = vmatprep.subr.bf16.mxu0 0
    %360 = vmatpush1.bf16.msra.mxu0 0
    %361 = vmatprep.subr.bf16.mxu0 0
    %362 = vmatpush1.bf16.msra.mxu0 0
    %363 = vmatprep.subr.bf16.mxu0 0
    %364 = vmatpush1.bf16.msra.mxu0 0
    %365 = vmatprep.subr.bf16.mxu0 0
    %366 = vmatpush1.bf16.msra.mxu0 0
    %367 = vmatprep.mubr.bf16.mxu0 0
    %368 = vmatmul.mubr.bf16.gmra.mrb[0].mxu0 %v333
    %v369 = vpop.f32.mrb[0].mxu0
    %v370 = vadd.f32 %v319, %v369
    %v371 = vpop.f32.mrb[0].mxu0
    %v372 = vpop.f32.mrb[0].mxu0
    %v373 = vadd.f32 %v324, %v372
    %v374 = vpop.f32.mrb[0].mxu0
    %375 = vdwg.mxu0
    %v376 = vand.u32 2147483647, %v370
    %v377 = vand.u32 2147483647, %v373
    %v378 = vld [vmem:[%s20] sm:$0xff]
    %v379 = vld [vmem:[%s20 + $0x8] sm:$0xff]
    %v380 = vld [vmem:[%s20 + $0x10] sm:$0xff]
    %v381 = vld [vmem:[%s20 + $0x18] sm:$0xff]
    %v382 = vld [vmem:[%s20 + $0x20] sm:$0xff]
    %v383 = vld [vmem:[%s20 + $0x28] sm:$0xff]
    %v384 = vld [vmem:[%s20 + $0x30] sm:$0xff]
    %v385 = vld [vmem:[%s20 + $0x38] sm:$0xff]
    %v386 = vld [vmem:[%s20 + $0x40] sm:$0xff]
    %v387 = vld [vmem:[%s20 + $0x48] sm:$0xff]
    %v388 = vld [vmem:[%s20 + $0x50] sm:$0xff]
    %v389 = vld [vmem:[%s20 + $0x58] sm:$0xff]
    %v390 = vld [vmem:[%s20 + $0x60] sm:$0xff]
    %v391 = vld [vmem:[%s20 + $0x68] sm:$0xff]
    %v392 = vld [vmem:[%s20 + $0x70] sm:$0xff]
    %v393 = vld [vmem:[%s20 + $0x78] sm:$0xff]
    %394 = vmatprep.subr.mxu0 0.0
    %395 = vmatpush1.msra.mxu0 %v378
    %396 = vmatprep.subr.mxu0 0.0
    %397 = vmatpush1.msra.mxu0 %v379
    %398 = vmatprep.subr.mxu0 0.0
    %399 = vmatpush1.msra.mxu0 %v380
    %400 = vmatprep.subr.mxu0 0.0
    %401 = vmatpush1.msra.mxu0 %v381
    %402 = vmatprep.subr.mxu0 0.0
    %403 = vmatpush1.msra.mxu0 %v382
    %404 = vmatprep.subr.mxu0 0.0
    %405 = vmatpush1.msra.mxu0 %v383
    %406 = vmatprep.subr.mxu0 0.0
    %407 = vmatpush1.msra.mxu0 %v384
    %408 = vmatprep.subr.mxu0 0.0
    %409 = vmatpush1.msra.mxu0 %v385
    %410 = vmatprep.subr.mxu0 0.0
    %411 = vmatpush1.msra.mxu0 %v386
    %412 = vmatprep.subr.mxu0 0.0
    %413 = vmatpush1.msra.mxu0 %v387
    %414 = vmatprep.subr.mxu0 0.0
    %415 = vmatpush1.msra.mxu0 %v388
    %416 = vmatprep.subr.mxu0 0.0
    %417 = vmatpush1.msra.mxu0 %v389
    %418 = vmatprep.subr.mxu0 0.0
    %419 = vmatpush1.msra.mxu0 %v390
    %420 = vmatprep.subr.mxu0 0.0
    %421 = vmatpush1.msra.mxu0 %v391
    %422 = vmatprep.subr.mxu0 0.0
    %423 = vmatpush1.msra.mxu0 %v392
    %424 = vmatprep.subr.mxu0 0.0
    %425 = vmatpush1.msra.mxu0 %v393
    %426 = vmatprep.subr.mxu0 0.0
    %427 = vmatpush1.msra.mxu0 0.0
    %428 = vmatprep.subr.mxu0 0.0
    %429 = vmatpush1.msra.mxu0 0.0
    %430 = vmatprep.subr.mxu0 0.0
    %431 = vmatpush1.msra.mxu0 0.0
    %432 = vmatprep.subr.mxu0 0.0
    %433 = vmatpush1.msra.mxu0 0.0
    %434 = vmatprep.subr.mxu0 0.0
    %435 = vmatpush1.msra.mxu0 0.0
    %436 = vmatprep.subr.mxu0 0.0
    %437 = vmatpush1.msra.mxu0 0.0
    %438 = vmatprep.subr.mxu0 0.0
    %439 = vmatpush1.msra.mxu0 0.0
    %440 = vmatprep.subr.mxu0 0.0
    %441 = vmatpush1.msra.mxu0 0.0
    %442 = vmatprep.subr.mxu0 0.0
    %443 = vmatpush1.msra.mxu0 0.0
    %444 = vmatprep.subr.mxu0 0.0
    %445 = vmatpush1.msra.mxu0 0.0
    %446 = vmatprep.subr.mxu0 0.0
    %447 = vmatpush1.msra.mxu0 0.0
    %448 = vmatprep.subr.mxu0 0.0
    %449 = vmatpush1.msra.mxu0 0.0
    %450 = vmatprep.subr.mxu0 0.0
    %451 = vmatpush1.msra.mxu0 0.0
    %452 = vmatprep.subr.mxu0 0.0
    %453 = vmatpush1.msra.mxu0 0.0
    %454 = vmatprep.subr.mxu0 0.0
    %455 = vmatpush1.msra.mxu0 0.0
    %456 = vmatprep.subr.mxu0 0.0
    %457 = vmatpush1.msra.mxu0 0.0
    %458 = vmatprep.mubr.f32.mxu0 0.0
    %459 = vmatmul.mubr.f32.gmra.mrb[0].mxu0 %v376
    %v460 = vpop.f32.mrb[0].mxu0
    %v461 = vadd.f32 0.0, %v460
    %v462 = vpop.f32.mrb[0].mxu0
    %463 = vmatprep.mubr.f32.mxu0 0.0
    %464 = vmatmul.mubr.f32.gmra.mrb[0].mxu0 %v377
    %v465 = vpop.f32.mrb[0].mxu0
    %v466 = vadd.f32 0.0, %v465
    %v467 = vpop.f32.mrb[0].mxu0
    %468 = vdwg.mxu0
    %v469 = vld [vmem:[%s12] sm:$0xff]
    %v470 = vld [vmem:[%s12 + $0x8] sm:$0xff]
    %v471 = vld [vmem:[%s13] sm:$0xff]
    %v472 = vld [vmem:[%s13 + $0x8] sm:$0xff]
    %474 = vset.pattern.permute.xlu0 0
    %475 = vperm.xlu0 %474, %v471
    %v476 = vpop.permute.xlu0 %475
    %479 = vset.pattern.permute.xlu0 0
    %480 = vperm.xlu0 %479, %v472
    %v481 = vpop.permute.xlu0 %480
    %vm483 = vcmask 130048
    %v485 = vsel %vm483, %v469, 0
    %v488 = vsel %vm483, %v470, 0
    %490 = vmatprep.subr.mxu0 0.0
    %491 = vmatpush1.msra.mxu0 %v461
    %492 = vmatprep.subr.mxu0 0.0
    %493 = vmatpush1.msra.mxu0 %v466
    %494 = vmatprep.subr.mxu0 0.0
    %495 = vmatpush1.msra.mxu0 0.0
    %496 = vmatprep.subr.mxu0 0.0
    %497 = vmatpush1.msra.mxu0 0.0
    %498 = vmatprep.subr.mxu0 0.0
    %499 = vmatpush1.msra.mxu0 0.0
    %500 = vmatprep.subr.mxu0 0.0
    %501 = vmatpush1.msra.mxu0 0.0
    %502 = vmatprep.subr.mxu0 0.0
    %503 = vmatpush1.msra.mxu0 0.0
    %504 = vmatprep.subr.mxu0 0.0
    %505 = vmatpush1.msra.mxu0 0.0
    %506 = vmatprep.subr.mxu0 0.0
    %507 = vmatpush1.msra.mxu0 0.0
    %508 = vmatprep.subr.mxu0 0.0
    %509 = vmatpush1.msra.mxu0 0.0
    %510 = vmatprep.subr.mxu0 0.0
    %511 = vmatpush1.msra.mxu0 0.0
    %512 = vmatprep.subr.mxu0 0.0
    %513 = vmatpush1.msra.mxu0 0.0
    %514 = vmatprep.subr.mxu0 0.0
    %515 = vmatpush1.msra.mxu0 0.0
    %516 = vmatprep.subr.mxu0 0.0
    %517 = vmatpush1.msra.mxu0 0.0
    %518 = vmatprep.subr.mxu0 0.0
    %519 = vmatpush1.msra.mxu0 0.0
    %520 = vmatprep.subr.mxu0 0.0
    %521 = vmatpush1.msra.mxu0 0.0
    %522 = vmatprep.subr.mxu0 0.0
    %523 = vmatpush1.msra.mxu0 0.0
    %524 = vmatprep.subr.mxu0 0.0
    %525 = vmatpush1.msra.mxu0 0.0
    %526 = vmatprep.subr.mxu0 0.0
    %527 = vmatpush1.msra.mxu0 0.0
    %528 = vmatprep.subr.mxu0 0.0
    %529 = vmatpush1.msra.mxu0 0.0
    %530 = vmatprep.subr.mxu0 0.0
    %531 = vmatpush1.msra.mxu0 0.0
    %532 = vmatprep.subr.mxu0 0.0
    %533 = vmatpush1.msra.mxu0 0.0
    %534 = vmatprep.subr.mxu0 0.0
    %535 = vmatpush1.msra.mxu0 0.0
    %536 = vmatprep.subr.mxu0 0.0
    %537 = vmatpush1.msra.mxu0 0.0
    %538 = vmatprep.subr.mxu0 0.0
    %539 = vmatpush1.msra.mxu0 0.0
    %540 = vmatprep.subr.mxu0 0.0
    %541 = vmatpush1.msra.mxu0 0.0
    %542 = vmatprep.subr.mxu0 0.0
    %543 = vmatpush1.msra.mxu0 0.0
    %544 = vmatprep.subr.mxu0 0.0
    %545 = vmatpush1.msra.mxu0 0.0
    %546 = vmatprep.subr.mxu0 0.0
    %547 = vmatpush1.msra.mxu0 0.0
    %548 = vmatprep.subr.mxu0 0.0
    %549 = vmatpush1.msra.mxu0 0.0
    %550 = vmatprep.subr.mxu0 0.0
    %551 = vmatpush1.msra.mxu0 0.0
    %552 = vmatprep.subr.mxu0 0.0
    %553 = vmatpush1.msra.mxu0 0.0
    %554 = vmatprep.mubr.f32.mxu0 0.0
    %555 = vmatmul.mubr.f32.gmra.mrb[0].mxu0 %v485
    %v556 = vpop.f32.mrb[0].mxu0
    %v557 = vadd.f32 %v476, %v556
    %v558 = vpop.f32.mrb[0].mxu0
    %559 = vmatprep.mubr.f32.mxu0 0.0
    %560 = vmatmul.mubr.f32.gmra.mrb[0].mxu0 %v488
    %v561 = vpop.f32.mrb[0].mxu0
    %v562 = vadd.f32 %v481, %v561
    %v563 = vpop.f32.mrb[0].mxu0
    %564 = vdwg.mxu0
    %vm565 = vcmask 64512
    %v566 = vsel %vm565, %v557, 0.0
    %567 = vadd.xlane.f32.xlu0 %v566
    %v568 = vpop.xlane.xlu0 %567
    %v569 = vsel %vm565, %v562, 0.0
    %570 = vadd.xlane.f32.xlu0 %v569
    %v571 = vpop.xlane.xlu0 %570
    %v572 = vrcp.pop 8.0
    %v573 = vmul.f32 %v568, %v572
    %v574 = vmul.f32 %v571, %v572
    %v575 = vsub.f32 %v557, %v573
    %v576 = vsub.f32 %v562, %v574
    %v577 = vmul.f32 %v575, %v575
    %v578 = vmul.f32 %v576, %v576
    %v579 = vsel %vm565, %v577, 0.0
    %580 = vadd.xlane.f32.xlu0 %v579
    %v581 = vpop.xlane.xlu0 %580
    %v582 = vsel %vm565, %v578, 0.0
    %583 = vadd.xlane.f32.xlu0 %v582
    %v584 = vpop.xlane.xlu0 %583
    %v585 = vmul.f32 %v581, %v572
    %v586 = vmul.f32 %v584, %v572
    %v587 = vadd.f32 %v585, 1e-05
    %v588 = vadd.f32 %v586, 1e-05
    %v589 = vrsqrt.pop %v587
    %v590 = vrsqrt.pop %v588
    %v591 = vmul.f32 %v575, %v589
    %v592 = vmul.f32 %v576, %v590
    %v593 = vld [vmem:[%s14] sm:$0xff]
    %v594 = vld [vmem:[%s14 + $0x8] sm:$0xff]
    %596 = vset.pattern.permute.xlu0 0
    %597 = vperm.xlu0 %596, %v593
    %v598 = vpop.permute.xlu0 %597
    %601 = vset.pattern.permute.xlu0 0
    %602 = vperm.xlu0 %601, %v594
    %v603 = vpop.permute.xlu0 %602
    %v605 = vmul.f32 %v591, %v598
    %v606 = vmul.f32 %v592, %v603
    %v607 = vld [vmem:[%s15] sm:$0xff]
    %v608 = vld [vmem:[%s15 + $0x8] sm:$0xff]
    %610 = vset.pattern.permute.xlu0 0
    %611 = vperm.xlu0 %610, %v607
    %v612 = vpop.permute.xlu0 %611
    %615 = vset.pattern.permute.xlu0 0
    %616 = vperm.xlu0 %615, %v608
    %v617 = vpop.permute.xlu0 %616
    %v619 = vadd.f32 %v605, %v612
    %v620 = vadd.f32 %v606, %v617
    %v621 = vmax.f32 %v619, 0.0
    %v622 = vmax.f32 %v620, 0.0
    %v623 = vld [vmem:[%s16] sm:$0xff]
    %v624 = vld [vmem:[%s16 + $0x8] sm:$0xff]
    %v625 = vld [vmem:[%s17] sm:$0xff]
    %v626 = vld [vmem:[%s17 + $0x8] sm:$0xff]
    %628 = vset.pattern.permute.xlu0 0
    %629 = vperm.xlu0 %628, %v625
    %v630 = vpop.permute.xlu0 %629
    %633 = vset.pattern.permute.xlu0 0
    %634 = vperm.xlu0 %633, %v626
    %v635 = vpop.permute.xlu0 %634
    %v638 = vsel %vm483, %v623, 0
    %v641 = vsel %vm483, %v624, 0
    %643 = vmatprep.subr.mxu0 0.0
    %644 = vmatpush1.msra.mxu0 %v621
    %645 = vmatprep.subr.mxu0 0.0
    %646 = vmatpush1.msra.mxu0 %v622
    %647 = vmatprep.subr.mxu0 0.0
    %648 = vmatpush1.msra.mxu0 0.0
    %649 = vmatprep.subr.mxu0 0.0
    %650 = vmatpush1.msra.mxu0 0.0
    %651 = vmatprep.subr.mxu0 0.0
    %652 = vmatpush1.msra.mxu0 0.0
    %653 = vmatprep.subr.mxu0 0.0
    %654 = vmatpush1.msra.mxu0 0.0
    %655 = vmatprep.subr.mxu0 0.0
    %656 = vmatpush1.msra.mxu0 0.0
    %657 = vmatprep.subr.mxu0 0.0
    %658 = vmatpush1.msra.mxu0 0.0
    %659 = vmatprep.subr.mxu0 0.0
    %660 = vmatpush1.msra.mxu0 0.0
    %661 = vmatprep.subr.mxu0 0.0
    %662 = vmatpush1.msra.mxu0 0.0
    %663 = vmatprep.subr.mxu0 0.0
    %664 = vmatpush1.msra.mxu0 0.0
    %665 = vmatprep.subr.mxu0 0.0
    %666 = vmatpush1.msra.mxu0 0.0
    %667 = vmatprep.subr.mxu0 0.0
    %668 = vmatpush1.msra.mxu0 0.0
    %669 = vmatprep.subr.mxu0 0.0
    %670 = vmatpush1.msra.mxu0 0.0
    %671 = vmatprep.subr.mxu0 0.0
    %672 = vmatpush1.msra.mxu0 0.0
    %673 = vmatprep.subr.mxu0 0.0
    %674 = vmatpush1.msra.mxu0 0.0
    %675 = vmatprep.subr.mxu0 0.0
    %676 = vmatpush1.msra.mxu0 0.0
    %677 = vmatprep.subr.mxu0 0.0
    %678 = vmatpush1.msra.mxu0 0.0
    %679 = vmatprep.subr.mxu0 0.0
    %680 = vmatpush1.msra.mxu0 0.0
    %681 = vmatprep.subr.mxu0 0.0
    %682 = vmatpush1.msra.mxu0 0.0
    %683 = vmatprep.subr.mxu0 0.0
    %684 = vmatpush1.msra.mxu0 0.0
    %685 = vmatprep.subr.mxu0 0.0
    %686 = vmatpush1.msra.mxu0 0.0
    %687 = vmatprep.subr.mxu0 0.0
    %688 = vmatpush1.msra.mxu0 0.0
    %689 = vmatprep.subr.mxu0 0.0
    %690 = vmatpush1.msra.mxu0 0.0
    %691 = vmatprep.subr.mxu0 0.0
    %692 = vmatpush1.msra.mxu0 0.0
    %693 = vmatprep.subr.mxu0 0.0
    %694 = vmatpush1.msra.mxu0 0.0
    %695 = vmatprep.subr.mxu0 0.0
    %696 = vmatpush1.msra.mxu0 0.0
    %697 = vmatprep.subr.mxu0 0.0
    %698 = vmatpush1.msra.mxu0 0.0
    %699 = vmatprep.subr.mxu0 0.0
    %700 = vmatpush1.msra.mxu0 0.0
    %701 = vmatprep.subr.mxu0 0.0
    %702 = vmatpush1.msra.mxu0 0.0
    %703 = vmatprep.subr.mxu0 0.0
    %704 = vmatpush1.msra.mxu0 0.0
    %705 = vmatprep.subr.mxu0 0.0
    %706 = vmatpush1.msra.mxu0 0.0
    %707 = vmatprep.mubr.f32.mxu0 0.0
    %708 = vmatmul.mubr.f32.gmra.mrb[0].mxu0 %v638
    %v709 = vpop.f32.mrb[0].mxu0
    %v710 = vadd.f32 %v630, %v709
    %v711 = vpop.f32.mrb[0].mxu0
    %712 = vmatprep.mubr.f32.mxu0 0.0
    %713 = vmatmul.mubr.f32.gmra.mrb[0].mxu0 %v641
    %v714 = vpop.f32.mrb[0].mxu0
    %v715 = vadd.f32 %v635, %v714
    %v716 = vpop.f32.mrb[0].mxu0
    %717 = vdwg.mxu0
    %v718 = vxor.u32 %v710, 2147483648
    %v719 = vxor.u32 %v715, 2147483648
    %v720 = vmul.f32 %v718, 1.442695
    %v721 = vpow.pop %v720
    %v722 = vmul.f32 %v719, 1.442695
    %v723 = vpow.pop %v722
    %v724 = vadd.f32 %v721, 1.0
    %v725 = vadd.f32 %v723, 1.0
    %v726 = vrcp.pop %v724
    %v727 = vmul.f32 1.0, %v726
    %v728 = vrcp.pop %v725
    %v729 = vmul.f32 1.0, %v728
    %v730 = vmul.f32 %v461, %v727
    %v731 = vmul.f32 %v466, %v729
    %v732 = vld [vmem:[%s21] sm:$0xff]
    %v734 = vsel %vm565, %v730, 0
    %v737 = vsel %vm565, %v731, 0
    %739 = vmatprep.subr.mxu0 0.0
    %740 = vmatpush1.msra.mxu0 %v732
    %741 = vmatprep.subr.mxu0 0.0
    %742 = vmatpush1.msra.mxu0 0.0
    %743 = vmatprep.subr.mxu0 0.0
    %744 = vmatpush1.msra.mxu0 0.0
    %745 = vmatprep.subr.mxu0 0.0
    %746 = vmatpush1.msra.mxu0 0.0
    %747 = vmatprep.subr.mxu0 0.0
    %748 = vmatpush1.msra.mxu0 0.0
    %749 = vmatprep.subr.mxu0 0.0
    %750 = vmatpush1.msra.mxu0 0.0
    %751 = vmatprep.subr.mxu0 0.0
    %752 = vmatpush1.msra.mxu0 0.0
    %753 = vmatprep.subr.mxu0 0.0
    %754 = vmatpush1.msra.mxu0 0.0
    %755 = vmatprep.subr.mxu0 0.0
    %756 = vmatpush1.msra.mxu0 0.0
    %757 = vmatprep.subr.mxu0 0.0
    %758 = vmatpush1.msra.mxu0 0.0
    %759 = vmatprep.subr.mxu0 0.0
    %760 = vmatpush1.msra.mxu0 0.0
    %761 = vmatprep.subr.mxu0 0.0
    %762 = vmatpush1.msra.mxu0 0.0
    %763 = vmatprep.subr.mxu0 0.0
    %764 = vmatpush1.msra.mxu0 0.0
    %765 = vmatprep.subr.mxu0 0.0
    %766 = vmatpush1.msra.mxu0 0.0
    %767 = vmatprep.subr.mxu0 0.0
    %768 = vmatpush1.msra.mxu0 0.0
    %769 = vmatprep.subr.mxu0 0.0
    %770 = vmatpush1.msra.mxu0 0.0
    %771 = vmatprep.subr.mxu0 0.0
    %772 = vmatpush1.msra.mxu0 0.0
    %773 = vmatprep.subr.mxu0 0.0
    %774 = vmatpush1.msra.mxu0 0.0
    %775 = vmatprep.subr.mxu0 0.0
    %776 = vmatpush1.msra.mxu0 0.0
    %777 = vmatprep.subr.mxu0 0.0
    %778 = vmatpush1.msra.mxu0 0.0
    %779 = vmatprep.subr.mxu0 0.0
    %780 = vmatpush1.msra.mxu0 0.0
    %781 = vmatprep.subr.mxu0 0.0
    %782 = vmatpush1.msra.mxu0 0.0
    %783 = vmatprep.subr.mxu0 0.0
    %784 = vmatpush1.msra.mxu0 0.0
    %785 = vmatprep.subr.mxu0 0.0
    %786 = vmatpush1.msra.mxu0 0.0
    %787 = vmatprep.subr.mxu0 0.0
    %788 = vmatpush1.msra.mxu0 0.0
    %789 = vmatprep.subr.mxu0 0.0
    %790 = vmatpush1.msra.mxu0 0.0
    %791 = vmatprep.subr.mxu0 0.0
    %792 = vmatpush1.msra.mxu0 0.0
    %793 = vmatprep.subr.mxu0 0.0
    %794 = vmatpush1.msra.mxu0 0.0
    %795 = vmatprep.subr.mxu0 0.0
    %796 = vmatpush1.msra.mxu0 0.0
    %797 = vmatprep.subr.mxu0 0.0
    %798 = vmatpush1.msra.mxu0 0.0
    %799 = vmatprep.subr.mxu0 0.0
    %800 = vmatpush1.msra.mxu0 0.0
    %801 = vmatprep.subr.mxu0 0.0
    %802 = vmatpush1.msra.mxu0 0.0
    %803 = vmatprep.mubr.f32.mxu0 0.0
    %804 = vmatmul.mubr.f32.gmra.mrb[0].mxu0 %v734
    %v805 = vpop.f32.mrb[0].mxu0
    %v806 = vadd.f32 0.0, %v805
    %v807 = vpop.f32.mrb[0].mxu0
    %808 = vmatprep.mubr.f32.mxu0 0.0
    %809 = vmatmul.mubr.f32.gmra.mrb[0].mxu0 %v737
    %v810 = vpop.f32.mrb[0].mxu0
    %v811 = vadd.f32 0.0, %v810
    %v812 = vpop.f32.mrb[0].mxu0
    %813 = vdwg.mxu0
    %v814 = vsub.f32 %v376, %v806
    %v815 = vsub.f32 %v377, %v811
    %v816 = vmax.f32 %v814, 0.0
    %v817 = vmax.f32 %v815, 0.0
    %vm818 = vcmp.ge.f32.partialorder %v370, 0.0
    %vm819 = vcmp.ge.f32.partialorder %v373, 0.0
    %v820 = vsub.f32 0.0, %v816
    %v821 = vsub.f32 0.0, %v817
    %v822 = vsel %vm818, %v816, %v820
    %v823 = vsel %vm819, %v817, %v821
    %v824 = vld [vmem:[%s3] sm:$0xff]
    %v825 = vld [vmem:[%s3 + $0x8] sm:$0xff]
    %v826 = vadd.f32 %v822, %v824
    %v827 = vadd.f32 %v823, %v825
    %828 = vst [vmem:[#allocation2] sm:$0xff] %v826
    %829 = vst [vmem:[#allocation2 + $0x8] sm:$0xff] %v827
    // Predicated region
    $region90: #{tpu_custom_call.1} parent=1 // pred_check
      _
    $region91: #{tpu_custom_call.1} parent=1 // pred_check_branch
      %831 = sbr.rel (0) target = $region93
    $region92: #{tpu_custom_call.1} parent=1 // pred_region
      %s833 = ssub.s32 256, 256
      %834 = vsyncadd [#allocation3], %s833
      %s835 = sshll.u32 [#allocation2], 4
      %s836 = int_to_ptr.vmem [resolvable:$true] %s835
      %841 = dma.vmem_to_hbm [thread:$0]  %s836, 256, %s22, [#allocation3], 128, 128, 8
    $region93: #{tpu_custom_call.1} parent=1 // pred_fallthru
      _
    // Predicated region
    $region94: #{tpu_custom_call.1} parent=1 // pred_check
      _
    $region95: #{tpu_custom_call.1} parent=1 // pred_check_branch
      %843 = sbr.rel (0) target = $region97
    $region96: #{tpu_custom_call.1} parent=1 // pred_region
      %844 = dma.done [#allocation3], 256
    $region97: #{tpu_custom_call.1} parent=1 // pred_fallthru
      _
    %845 = vsyncpa [#allocation3], 1

</llo_original>
